<compile_context>
chip_gen: v7x
topology: tpu7x:2x2x1
jax: 0.10.0
libtpu: 0.0.40
codegen_flags: <defaults>
</compile_context>

<pallas_src>
import functools
import math

import jax
import jax.numpy as jnp
from jax import lax
from jax.experimental import pallas as pl
from jax.experimental.pallas import tpu as pltpu


def _ls_loss_kernel(tgt_ref, pred_ref, out_ref, *, n_rows, block_n, confidence,
                    smoothing_value, row_const, ignore_index, with_logits):
    x = pred_ref[...].astype(jnp.float32)                 # (TN, C)
    tn, c = x.shape
    tgt = tgt_ref[...]                                    # (TN, 1) int32

    # (1, C) lane iota broadcast against the (TN, 1) target column.
    col = lax.broadcasted_iota(jnp.int32, (1, c), 1)

    # x at the target column: one masked select + row reduce (no gather).
    x_tgt = jnp.sum(jnp.where(col == tgt, x, 0.0), axis=-1, keepdims=True)
    # x at the compile-time-constant ignore column: static lane slice.
    x_ign = x[:, ignore_index:ignore_index + 1]
    # Row sum of x.
    x_sum = jnp.sum(x, axis=-1, keepdims=True)

    # sum_c p_c * x_c  with p[tgt]=confidence, p[ignore]=0, else smoothing.
    px = ((confidence - smoothing_value) * x_tgt
          + smoothing_value * (x_sum - x_ign))

    if with_logits:
        # logq = x - lse ; sum_c p_c == 1  =>  sum_c p_c*logq_c = px - lse
        m = jnp.max(x, axis=-1, keepdims=True)
        lse = jnp.log(jnp.sum(jnp.exp(x - m), axis=-1, keepdims=True)) + m
        kl_row = row_const - px + lse
    else:
        kl_row = row_const - px

    # Keep only real rows (the last grid block may read past N -> garbage) with
    # a non-ignored target.  jnp.where selects, so garbage/NaN rows yield 0.
    row = block_n * pl.program_id(0) + lax.broadcasted_iota(jnp.int32, (tn, 1), 0)
    keep = (row < n_rows) & (tgt != ignore_index)
    out_ref[...] = jnp.where(keep, kl_row, 0.0)


def label_smoothing_loss(predictions, target, *, label_smoothing=0.1,
                         ignore_index=0, with_logits=True, block_n=None,
                         vmem_limit_bytes=None):
    n, c = predictions.shape
    confidence = 1.0 - label_smoothing
    if label_smoothing > 0.0:
        assert c > 2, "label smoothing needs a vocab size > 2"
        smoothing_value = label_smoothing / (c - 2)
    else:
        smoothing_value = 0.0

    # sum_c p_c * log(p_c) for a non-ignored row, with 0*log(0) := 0
    # (matches KLDivLoss' xlogy convention).
    row_const = 0.0
    if confidence > 0.0:
        row_const += confidence * math.log(confidence)
    if smoothing_value > 0.0:
        row_const += label_smoothing * math.log(smoothing_value)   # (C-2)*s*log(s)

    itemsize = jnp.dtype(predictions.dtype).itemsize
    sublane = 8 if itemsize >= 4 else 16                  # bf16 min tile is (16, 128)

    # ------ VMEM budget / tile sizing (HBM-bound streaming kernel) -----------
    try:
        phys = pltpu.get_tpu_info().vmem_capacity_bytes
    except Exception:
        phys = 128 * 1024 * 1024
    if vmem_limit_bytes is None:
        # 48 MiB on v7x (64 MiB physical), 64 MiB on v5e/v6e (128 MiB physical).
        vmem_limit_bytes = min((phys * 3) // 4, 64 * 1024 * 1024)

    n_ceil = -(-n // sublane) * sublane
    if block_n is None:
        # Working set per row: double-buffered input + ~4 f32 (row, C) temps
        # (x cast, exp(x-m), masked select, compare mask).
        ws_row = max(c * (2 * itemsize + 4 * 4), 1)
        block_ws = int(0.6 * vmem_limit_bytes) // ws_row
        # Byte cap on the streamed input tile (per-step-overhead sweet spot):
        # ~6 MiB when VMEM is small (v7x), ~12 MiB on v5e/v6e.
        tile_cap = (6 if phys <= 64 * 1024 * 1024 else 12) * 1024 * 1024
        block_cap = tile_cap // max(c * itemsize, 1)
        block_n = max(sublane, min(block_ws, block_cap))
    block_n = max(sublane, (block_n // sublane) * sublane)
    block_n = min(block_n, n_ceil)

    num_blocks = -(-n // block_n)
    # Keep >= 2 grid steps when possible so megacore (v7x) can split the axis.
    if num_blocks < 2 and n_ceil > sublane:
        half = ((n_ceil // 2 + sublane - 1) // sublane) * sublane
        if sublane <= half < block_n:
            block_n = half
            num_blocks = -(-n // block_n)

    tgt2d = target.astype(jnp.int32).reshape(n, 1)

    kernel = functools.partial(
        _ls_loss_kernel,
        n_rows=n,
        block_n=block_n,
        confidence=float(confidence),
        smoothing_value=float(smoothing_value),
        row_const=float(row_const),
        ignore_index=int(ignore_index),
        with_logits=with_logits,
    )

    per_row = pl.pallas_call(
        kernel,
        out_shape=jax.ShapeDtypeStruct((n, 1), jnp.float32),
        grid_spec=pltpu.PrefetchScalarGridSpec(
            num_scalar_prefetch=0,
            grid=(num_blocks,),
            in_specs=[
                pl.BlockSpec((block_n, 1), lambda i: (i, 0)),   # target ids
                pl.BlockSpec((block_n, c), lambda i: (i, 0)),   # predictions
            ],
            out_specs=pl.BlockSpec((block_n, 1), lambda i: (i, 0)),
        ),
        compiler_params=pltpu.CompilerParams(
            # Independent row tiles -> megacore can shard the grid axis.
            dimension_semantics=("parallel",),
            vmem_limit_bytes=int(vmem_limit_bytes),
        ),
    )(tgt2d, predictions)

    # reduction='mean' over all N*C elements.
    return jnp.sum(per_row) / jnp.float32(n * c)


def _reference(predictions, target, *, label_smoothing=0.1, ignore_index=0):
    n, c = predictions.shape
    confidence = 1.0 - label_smoothing
    smoothing_value = label_smoothing / (c - 2)
    logq = jax.nn.log_softmax(predictions.astype(jnp.float32), axis=-1)
    col = jnp.arange(c)[None, :]
    tgt = target[:, None]
    p = jnp.where(col == tgt, confidence, smoothing_value)
    p = jnp.where(col == ignore_index, 0.0, p)
    p = jnp.where(tgt == ignore_index, 0.0, p)
    kl = jnp.where(p > 0.0,
                   p * (jnp.log(jnp.where(p > 0.0, p, 1.0)) - logq), 0.0)
    return jnp.sum(kl) / (n * c)


if __name__ == "__main__":
    N, VOCAB = 8, 32
    key = jax.random.PRNGKey(0)
    k_pred, k_tgt = jax.random.split(key)
    predictions = jax.random.normal(k_pred, (N, VOCAB), dtype=jnp.float32)
    target = jax.random.randint(k_tgt, (N,), 0, VOCAB, dtype=jnp.int32)
    # force at least one padding token (ignore_index = 0)
    target = target.at[0].set(0)

    loss = label_smoothing_loss(predictions, target,
                                label_smoothing=0.1, ignore_index=0)
    loss = jax.block_until_ready(loss)

    ref = _reference(predictions, target, label_smoothing=0.1, ignore_index=0)
    assert jnp.allclose(loss, ref, rtol=5e-5, atol=1e-6), (loss, ref)
    print("KERNEL_OK")
</pallas_src>

<mosaic_0001>
module attributes {stable_mosaic.version = 11 : i64} {
  func.func @_ls_loss_kernel(%arg0: i32, %arg1: memref<8x1xi32, #tpu.memory_space<vmem>>, %arg2: memref<8x32xf32, #tpu.memory_space<vmem>>, %arg3: memref<8x1xf32, #tpu.memory_space<vmem>>) attributes {dimension_semantics = [#tpu.dimension_semantics<parallel>], iteration_bounds = array<i64: 1>, scalar_prefetch = 0 : i64, scratch_operands = 0 : i64, tpu.core_type = #tpu.core_type<tc>, window_params = [{transform_indices = @transform_0, window_bounds = array<i64: 8, 1>}, {transform_indices = @transform_1, window_bounds = array<i64: 8, 32>}, {transform_indices = @transform_2, window_bounds = array<i64: 8, 1>}]} {
    %c0 = arith.constant 0 : index
    %c0_0 = arith.constant 0 : index
    %0 = vector.load %arg2[%c0, %c0_0] : memref<8x32xf32, #tpu.memory_space<vmem>>, vector<8x32xf32>
    %c0_1 = arith.constant 0 : index
    %c0_2 = arith.constant 0 : index
    %1 = vector.load %arg1[%c0_1, %c0_2] : memref<8x1xi32, #tpu.memory_space<vmem>>, vector<8x1xi32>
    %2 = tpu.iota {dimensions = array<i32: 1>} : vector<1x32xi32>
    %3 = vector.broadcast %2 : vector<1x32xi32> to vector<8x32xi32>
    %4 = vector.broadcast %1 : vector<8x1xi32> to vector<8x32xi32>
    %5 = arith.cmpi eq, %3, %4 : vector<8x32xi32>
    %cst = arith.constant 0.000000e+00 : f32
    %6 = vector.broadcast %cst : f32 to vector<8x32xf32>
    %7 = arith.select %5, %0, %6 : vector<8x32xi1>, vector<8x32xf32>
    %cst_3 = arith.constant dense<0.000000e+00> : vector<8xf32>
    %8 = vector.multi_reduction <add>, %7, %cst_3 [1] : vector<8x32xf32> to vector<8xf32>
    %9 = vector.shape_cast %8 : vector<8xf32> to vector<8x1xf32>
    %10 = vector.extract_strided_slice %0 {offsets = [0, 0], sizes = [8, 1], strides = [1, 1]} : vector<8x32xf32> to vector<8x1xf32>
    %cst_4 = arith.constant dense<0.000000e+00> : vector<8xf32>
    %11 = vector.multi_reduction <add>, %0, %cst_4 [1] : vector<8x32xf32> to vector<8xf32>
    %12 = vector.shape_cast %11 : vector<8xf32> to vector<8x1xf32>
    %cst_5 = arith.constant 0.896666646 : f32
    %13 = vector.broadcast %cst_5 : f32 to vector<8x1xf32>
    %14 = arith.mulf %13, %9 : vector<8x1xf32>
    %15 = arith.subf %12, %10 : vector<8x1xf32>
    %cst_6 = arith.constant 0.00333333341 : f32
    %16 = vector.broadcast %cst_6 : f32 to vector<8x1xf32>
    %17 = arith.mulf %16, %15 : vector<8x1xf32>
    %18 = arith.addf %14, %17 : vector<8x1xf32>
    %cst_7 = arith.constant dense<0xFF800000> : vector<8xf32>
    %19 = vector.multi_reduction <maximumf>, %0, %cst_7 [1] : vector<8x32xf32> to vector<8xf32>
    %20 = vector.shape_cast %19 : vector<8xf32> to vector<8x1xf32>
    %21 = vector.broadcast %20 : vector<8x1xf32> to vector<8x32xf32>
    %22 = arith.subf %0, %21 : vector<8x32xf32>
    %23 = math.exp %22 : vector<8x32xf32>
    %cst_8 = arith.constant dense<0.000000e+00> : vector<8xf32>
    %24 = vector.multi_reduction <add>, %23, %cst_8 [1] : vector<8x32xf32> to vector<8xf32>
    %25 = vector.shape_cast %24 : vector<8xf32> to vector<8x1xf32>
    %26 = math.log %25 : vector<8x1xf32>
    %27 = arith.addf %26, %20 : vector<8x1xf32>
    %cst_9 = arith.constant -0.665202737 : f32
    %28 = vector.broadcast %cst_9 : f32 to vector<8x1xf32>
    %29 = arith.subf %28, %18 : vector<8x1xf32>
    %30 = arith.addf %29, %27 : vector<8x1xf32>
    %c8_i32 = arith.constant 8 : i32
    %31 = arith.muli %c8_i32, %arg0 : i32
    %32 = tpu.iota {dimensions = array<i32: 0>} : vector<8x1xi32>
    %33 = vector.broadcast %31 : i32 to vector<8x1xi32>
    %34 = arith.addi %33, %32 : vector<8x1xi32>
    %c8_i32_10 = arith.constant 8 : i32
    %35 = vector.broadcast %c8_i32_10 : i32 to vector<8x1xi32>
    %36 = arith.cmpi slt, %34, %35 : vector<8x1xi32>
    %c0_i32 = arith.constant 0 : i32
    %37 = vector.broadcast %c0_i32 : i32 to vector<8x1xi32>
    %38 = arith.cmpi ne, %1, %37 : vector<8x1xi32>
    %39 = arith.andi %36, %38 : vector<8x1xi1>
    %cst_11 = arith.constant 0.000000e+00 : f32
    %40 = vector.broadcast %cst_11 : f32 to vector<8x1xf32>
    %41 = arith.select %39, %30, %40 : vector<8x1xi1>, vector<8x1xf32>
    %c0_12 = arith.constant 0 : index
    %c0_13 = arith.constant 0 : index
    %42 = vector.load %arg3[%c0_12, %c0_13] : memref<8x1xf32, #tpu.memory_space<vmem>>, vector<8x1xf32>
    tpu.vector_store %arg3[%c0_12, %c0_13], %41 {strides = array<i32>} : memref<8x1xf32, #tpu.memory_space<vmem>>, vector<8x1xf32>,
    return
  }
  func.func @transform_0(%arg0: i32) -> (i32, i32) {
    %c0_i32 = arith.constant 0 : i32
    %c0_i32_0 = arith.constant 0 : i32
    return %arg0, %c0_i32 : i32, i32
  }
  func.func @transform_1(%arg0: i32) -> (i32, i32) {
    %c0_i32 = arith.constant 0 : i32
    %c0_i32_0 = arith.constant 0 : i32
    return %arg0, %c0_i32 : i32, i32
  }
  func.func @transform_2(%arg0: i32) -> (i32, i32) {
    %c0_i32 = arith.constant 0 : i32
    %c0_i32_0 = arith.constant 0 : i32
    return %arg0, %c0_i32 : i32, i32
  }
}

</mosaic_0001>

<llo_original>
// kernel: tpu_custom_call.1
$region0: #{tpu_custom_call.1}
  #allocation0 [shape = 'u32[]', space=smem, size = 0x4, offset = 0x4, fixed_abs, tag = 'smem constant byte address 0x4 - core index']
  #allocation1 [shape = 'u32[144,128]{1,0:T(1,128)}', space=vmem, size = 0x12000, scoped, tag = 'internal scratch']
  %s0 = inlined_call_operand.hbm [shape: s32[8,1], index: 0, kind: input, shape index: {}]
  %s1 = inlined_call_operand.hbm [shape: f32[8,32], index: 1, kind: input, shape index: {}]
  %s2 = inlined_call_operand.hbm [shape: f32[8,1], index: 2, kind: output, shape index: {}]
  %s3 = sld [smem:[#allocation0]]
  $region26: #{tpu_custom_call.1} parent=0
    _
  %s5 = ssub.s32 1, %s3
  %s6 = scalar_select 0, %s5, %s3
  $region1: #{tpu_custom_call.1} parent=0
    #allocation2 [shape = 'u8[4096]{0}', space=vmem, size = 0x1000, scoped, tag = 'input window, operand 0, single buffered']
    #allocation3 [shape = 's32[1]{0}', space=sflag, size = 0x4, scoped, tag = 'scoped memory for tpu_custom_call.1']
    #allocation4 [shape = 's32[1]{0}', space=sflag, size = 0x4, scoped, tag = 'scoped memory for tpu_custom_call.1']
    #allocation5 [shape = 'u8[4096]{0}', space=vmem, size = 0x1000, scoped, tag = 'input window, operand 1, single buffered']
    #allocation6 [shape = 's32[1]{0}', space=sflag, size = 0x4, scoped, tag = 'scoped memory for tpu_custom_call.1']
    #allocation7 [shape = 'u8[4096]{0}', space=vmem, size = 0x1000, scoped, tag = 'output window, operand 0, single buffered']
    %7 = vsyncpa [#allocation3], 0
    %8 = vsyncpa [#allocation6], 0
    %9 = vsyncpa [#allocation4], 0
    // Predicated region
    $region2: #{tpu_custom_call.1} parent=1 // pred_check
      _
    $region3: #{tpu_custom_call.1} parent=1 // pred_check_branch
      %11 = sbr.rel (0) target = $region5
    $region4: #{tpu_custom_call.1} parent=1 // pred_region
      %s13 = ssub.s32 128, 128
      %14 = vsyncadd [#allocation3], %s13
      %s16 = sshll.u32 [#allocation2], 4
      %s17 = int_to_ptr.vmem [resolvable:$true] %s16
      %19 = dma.hbm_to_vmem [thread:$0]  %s0, 128, %s17, [#allocation3]
    $region5: #{tpu_custom_call.1} parent=1 // pred_fallthru
      _
    // Predicated region
    $region6: #{tpu_custom_call.1} parent=1 // pred_check
      _
    $region7: #{tpu_custom_call.1} parent=1 // pred_check_branch
      %21 = sbr.rel (0) target = $region9
    $region8: #{tpu_custom_call.1} parent=1 // pred_region
      %s23 = ssub.s32 128, 128
      %24 = vsyncadd [#allocation6], %s23
      %s26 = sshll.u32 [#allocation5], 4
      %s27 = int_to_ptr.vmem [resolvable:$true] %s26
      %29 = dma.hbm_to_vmem [thread:$0]  %s1, 128, %s27, [#allocation6]
    $region9: #{tpu_custom_call.1} parent=1 // pred_fallthru
      _
    // Predicated region
    $region10: #{tpu_custom_call.1} parent=1 // pred_check
      _
    $region11: #{tpu_custom_call.1} parent=1 // pred_check_branch
      %31 = sbr.rel (0) target = $region13
    $region12: #{tpu_custom_call.1} parent=1 // pred_region
      %32 = dma.done [#allocation3], 128
    $region13: #{tpu_custom_call.1} parent=1 // pred_fallthru
      _
    // Predicated region
    $region14: #{tpu_custom_call.1} parent=1 // pred_check
      _
    $region15: #{tpu_custom_call.1} parent=1 // pred_check_branch
      %34 = sbr.rel (0) target = $region17
    $region16: #{tpu_custom_call.1} parent=1 // pred_region
      %35 = dma.done [#allocation6], 128
    $region17: #{tpu_custom_call.1} parent=1 // pred_fallthru
      _
    %v36 = vld [vmem:[#allocation5] sm:$0xff]
    %v37 = vld [vmem:[#allocation2] sm:$0xff]
    %v38 = vlaneseq
    %v39 = vand.u32 %v38, 127
    %40 = vset.pattern.permute.xlu0 0
    %41 = vperm.xlu0 %40, %v37
    %v42 = vpop.permute.xlu0 %41
    %vm43 = vcmp.eq.s32.totalorder %v39, %v42
    %v44 = vsel %vm43, %v36, 0.0
    %vm45 = vcmask 261120
    %v46 = vsel %vm45, %v44, 0.0
    %47 = vadd.xlane.f32.xlu0 %v46
    %v48 = vpop.xlane.xlu0 %47
    %v49 = vsel %vm45, %v36, 0.0
    %50 = vadd.xlane.f32.xlu0 %v49
    %v51 = vpop.xlane.xlu0 %50
    %v52 = vmul.f32 %v48, 0.89666665
    %v53 = vsub.f32 %v51, %v36
    %v54 = vmul.f32 %v53, 0.0033333334
    %v55 = vadd.f32 %v52, %v54
    %v56 = vsel %vm45, %v36, -inf
    %57 = vmax.xlane.f32.xlu0 %v56
    %v58 = vpop.xlane.xlu0 %57
    %v59 = vsub.f32 %v36, %v58
    %v60 = vmul.f32 %v59, 1.442695
    %v61 = vpow.pop %v60
    %v62 = vsel %vm45, %v61, 0.0
    %63 = vadd.xlane.f32.xlu0 %v62
    %v64 = vpop.xlane.xlu0 %63
    %v65 = vlog2.pop %v64
    %v66 = vmul.f32 %v65, 0.6931472
    %v67 = vadd.f32 %v66, %v58
    %v68 = vsub.f32 -0.66520274, %v55
    %v69 = vadd.f32 %v68, %v67
    %s70 = smul.u32 0, 8
    %v71 = vlaneseq
    %v72 = vshrl.u32 %v71, 7
    %v73 = vstv %s70
    %v74 = vadd.s32 %v73, %v72
    %vm75 = vcmp.lt.s32.totalorder %v74, 8
    %vm76 = vcmp.ne.s32.totalorder %v37, 0
    %vm77 = vmand %vm75, %vm76
    %v78 = vsel %vm77, %v69, 0.0
    %vm79 = vcmask 7168
    %80 = vst.msk [vmem:[#allocation7] sm:$0xff] %vm79, %v78
    // Predicated region
    $region18: #{tpu_custom_call.1} parent=1 // pred_check
      _
    $region19: #{tpu_custom_call.1} parent=1 // pred_check_branch
      %82 = sbr.rel (0) target = $region21
    $region20: #{tpu_custom_call.1} parent=1 // pred_region
      %s84 = ssub.s32 128, 128
      %85 = vsyncadd [#allocation4], %s84
      %s87 = sshll.u32 [#allocation7], 4
      %s88 = int_to_ptr.vmem [resolvable:$true] %s87
      %90 = dma.vmem_to_hbm [thread:$0]  %s88, 128, %s2, [#allocation4]
    $region21: #{tpu_custom_call.1} parent=1 // pred_fallthru
      _
    // Predicated region
    $region22: #{tpu_custom_call.1} parent=1 // pred_check
      _
    $region23: #{tpu_custom_call.1} parent=1 // pred_check_branch
      %92 = sbr.rel (0) target = $region25
    $region24: #{tpu_custom_call.1} parent=1 // pred_region
      %93 = dma.done [#allocation4], 128
    $region25: #{tpu_custom_call.1} parent=1 // pred_fallthru
      _
    %94 = vsyncpa [#allocation3], 1
    %95 = vsyncpa [#allocation6], 1
    %96 = vsyncpa [#allocation4], 1

</llo_original>
